<compile_context>
chip_gen: v7x
topology: tpu7x:2x2x1
jax: 0.10.0
libtpu: 0.0.40
codegen_flags: <defaults>
</compile_context>

<pallas_src>
import functools

import numpy as np
import jax
import jax.numpy as jnp
from jax import lax
from jax.experimental import pallas as pl
from jax.experimental.pallas import tpu as pltpu


def _round_up(x, m):
    return ((x + m - 1) // m) * m


def _conv_bn_relu_kernel(y_ref, w_ref, scale_ref, shift_ref, o_ref, *,
                         shifts, tm):
    """One grid step: 4 shifted (OC, 4C) @ (4C, tm) dots + BN + ReLU.

    y_ref:     (1, 4C, tm + halo) bf16  phase tile, flat spatial on lanes
    w_ref:     (4, OC, 4C)        bf16  per-(dh, dw) weight matrices
    scale_ref: (OC, 1)            f32   BN scale  = gamma / sqrt(var + eps)
    shift_ref: (OC, 1)            f32   BN shift  = beta - mean * scale
    o_ref:     (1, OC, tm)              output block (lane-dense)
    """
    y = y_ref[0]                                           # (4C, tm + halo)
    acc = jnp.dot(w_ref[0], y[:, :tm],
                  preferred_element_type=jnp.float32)      # (OC, tm) f32
    for k, s in enumerate(shifts[1:], start=1):
        acc = acc + jnp.dot(w_ref[k], y[:, s:s + tm],
                            preferred_element_type=jnp.float32)
    out = acc * scale_ref[...] + shift_ref[...]            # eval-mode BN
    o_ref[0] = jnp.maximum(out, 0.0).astype(o_ref.dtype)   # ReLU


def conv_dv_wh_forward(x, weight, gamma, beta, running_mean, running_var,
                       eps=1e-5, target_tm=4096, out_dtype=None):
    """x: (N, C, D, H, W).  weight: (OC, C, 1, 4, 4).  Returns NCDHW."""
    N, C, D, H, W = x.shape
    OC = weight.shape[0]
    Kh = Kw = 4
    Ph = Pw = 1
    Ho = (H + 2 * Ph - Kh) // 2 + 1
    Wo = (W + 2 * Pw - Kw) // 2 + 1
    out_dtype = x.dtype if out_dtype is None else out_dtype

    C4 = 4 * C                      # phase-expanded channels (c, h%2, w%2)
    S = (Ho + 1) * (Wo + 1)         # per-slice flat spatial (+1 halo row/col)
    Sp = _round_up(S, 128)          # lane-aligned per-slice pitch
    halo = _round_up(Wo + 2, 128)   # per-block halo for the shifted reads

    # ---- tile selection ---------------------------------------------------
    td = max(1, min(D, target_tm // Sp))          # depth slices per M block
    # Double-buffered input (bf16) + output (f32) footprint per block, kept
    # well under the v7x scoped-VMEM budget.
    per_slice_bytes = 2 * (C4 * 2 + OC * 4) * Sp
    td = max(1, min(td, (8 << 20) // per_slice_bytes))
    if N == 1 and D > 1 and td >= D:
        td = -(-D // 2)             # keep >= 2 parallel blocks for megacore
    Dp = _round_up(D, td)
    nblk = Dp // td
    tm = td * Sp

    # ---- glue: 4-way space-to-depth phase split (1x padded input, bf16) ----
    xp = jnp.pad(x, ((0, 0), (0, 0), (0, 0), (Ph, Ph), (Pw, Pw)))
    xp = xp.astype(jnp.bfloat16)
    phases = []
    for a in range(2):
        for b in range(2):
            phases.append(xp[:, :, :, a::2, b::2][:, :, :, :Ho + 1, :Wo + 1])
    y = jnp.stack(phases, axis=2)                 # (N, C, 4, D, Ho+1, Wo+1)
    y = y.reshape(N, C4, D, S)                    # composite ch = c*4+a*2+b
    y = jnp.pad(y, ((0, 0), (0, 0), (0, Dp - D), (0, Sp - S)))
    y = y.reshape(N, C4, nblk, tm)
    y = jnp.pad(y, ((0, 0), (0, 0), (0, 0), (0, halo)))   # per-block halo (zeros)
    y = y.reshape(N, C4, nblk * (tm + halo))

    # ---- weights: (OC,C,1,4,4) -> 4 shift matrices (dh, dw) of (OC, 4C) ----
    w = weight.reshape(OC, C, Kh, Kw).astype(jnp.float32)
    w = w.reshape(OC, C, 2, 2, 2, 2)              # (oc, c, dh, a, dw, b)
    w4 = jnp.transpose(w, (2, 4, 0, 1, 3, 5)).reshape(4, OC, C4)
    w4 = w4.astype(jnp.bfloat16)

    # Eval-mode BatchNorm as per-channel scale/shift, applied in f32 epilogue.
    scale = (gamma / jnp.sqrt(running_var + eps)).astype(jnp.float32)
    shift = (beta - running_mean * scale).astype(jnp.float32)
    scale = scale.reshape(OC, 1)
    shift = shift.reshape(OC, 1)

    # Flat-index offsets of the 4 (dh, dw) taps within one depth slice.
    shifts = (0, 1, Wo + 1, Wo + 2)
    kernel = functools.partial(_conv_bn_relu_kernel, shifts=shifts, tm=tm)

    flops = 2 * N * OC * C4 * len(shifts) * nblk * tm
    bytes_accessed = (y.size * 2 + w4.size * 2 + (scale.size + shift.size) * 4
                      + N * OC * nblk * tm * np.dtype(out_dtype).itemsize)

    out = pl.pallas_call(
        kernel,
        out_shape=jax.ShapeDtypeStruct((N, OC, nblk * tm), out_dtype),
        grid_spec=pltpu.PrefetchScalarGridSpec(
            num_scalar_prefetch=0,
            grid=(N, nblk),
            in_specs=[
                pl.BlockSpec((1, C4, tm + halo), lambda n, i: (n, 0, i)),  # phases
                pl.BlockSpec((4, OC, C4), lambda n, i: (0, 0, 0)),         # weights
                pl.BlockSpec((OC, 1), lambda n, i: (0, 0)),                # BN scale
                pl.BlockSpec((OC, 1), lambda n, i: (0, 0)),                # BN shift
            ],
            out_specs=pl.BlockSpec((1, OC, tm), lambda n, i: (n, 0, i)),
        ),
        compiler_params=pltpu.CompilerParams(
            dimension_semantics=("parallel", "parallel")),
        cost_estimate=pl.CostEstimate(
            flops=flops, transcendentals=0, bytes_accessed=bytes_accessed),
    )(y, w4, scale, shift)

    # Trim slice padding and the +1 halo row/col, then un-flatten to NCDHW.
    out = out.reshape(N, OC, Dp, Sp)[:, :, :D, :S]
    out = out.reshape(N, OC, D, Ho + 1, Wo + 1)[:, :, :, :Ho, :Wo]
    return out


def _reference(x, weight, gamma, beta, running_mean, running_var, eps=1e-5):
    """Pure-JAX f32 reference: Conv3d + eval-mode BN + ReLU (NCDHW)."""
    y = lax.conv_general_dilated(
        x, weight,
        window_strides=(1, 2, 2),
        padding=((0, 0), (1, 1), (1, 1)),
        dimension_numbers=("NCDHW", "OIDHW", "NCDHW"))
    scale = gamma / jnp.sqrt(running_var + eps)
    shift = beta - running_mean * scale
    y = y * scale[None, :, None, None, None] + shift[None, :, None, None, None]
    return jnp.maximum(y, 0.0)


if __name__ == "__main__":
    key = jax.random.PRNGKey(0)
    k_x, k_w = jax.random.split(key)

    # Small shapes consistent with the module: NCDHW, k=(1,4,4)/s=(1,2,2)/p=(0,1,1)
    N, Cin, Cout, D, H, W = 2, 4, 8, 3, 16, 16

    x = jax.random.normal(k_x, (N, Cin, D, H, W), dtype=jnp.float32)
    weight = 0.1 * jax.random.normal(k_w, (Cout, Cin, 1, 4, 4), dtype=jnp.float32)

    # Deterministic BatchNorm3d parameters / running stats.
    gamma = 1.0 + 0.1 * jnp.arange(Cout, dtype=jnp.float32)
    beta = 0.05 * jnp.arange(Cout, dtype=jnp.float32)
    running_mean = 0.01 * jnp.arange(Cout, dtype=jnp.float32)
    running_var = 1.0 + 0.02 * jnp.arange(Cout, dtype=jnp.float32)

    out = conv_dv_wh_forward(x, weight, gamma, beta, running_mean, running_var)
    out = jax.block_until_ready(out)

    ref = _reference(x, weight, gamma, beta, running_mean, running_var)
    assert out.shape == (N, Cout, D, H // 2, W // 2), out.shape
    # bf16 operands with f32 accumulation: loosen tolerance vs. f32 reference.
    assert jnp.allclose(out, ref, atol=5e-2, rtol=5e-2), float(
        jnp.max(jnp.abs(out - ref)))

    print("KERNEL_OK")
</pallas_src>

<mosaic_0001>
module attributes {stable_mosaic.version = 11 : i64} {
  func.func @_conv_bn_relu_kernel(%arg0: i32, %arg1: i32, %arg2: memref<1x16x512xbf16, #tpu.memory_space<vmem>>, %arg3: memref<4x8x16xbf16, #tpu.memory_space<vmem>>, %arg4: memref<8x1xf32, #tpu.memory_space<vmem>>, %arg5: memref<8x1xf32, #tpu.memory_space<vmem>>, %arg6: memref<1x8x384xf32, #tpu.memory_space<vmem>>) attributes {dimension_semantics = [#tpu.dimension_semantics<parallel>, #tpu.dimension_semantics<parallel>], iteration_bounds = array<i64: 2, 1>, scalar_prefetch = 0 : i64, scratch_operands = 0 : i64, tpu.core_type = #tpu.core_type<tc>, window_params = [{transform_indices = @transform_0, window_bounds = array<i64: 1, 16, 512>}, {pipeline_mode = #tpu.pipeline_mode<synchronous>, transform_indices = @transform_1, window_bounds = array<i64: 4, 8, 16>}, {pipeline_mode = #tpu.pipeline_mode<synchronous>, transform_indices = @transform_2, window_bounds = array<i64: 8, 1>}, {pipeline_mode = #tpu.pipeline_mode<synchronous>, transform_indices = @transform_3, window_bounds = array<i64: 8, 1>}, {transform_indices = @transform_4, window_bounds = array<i64: 1, 8, 384>}]} {
    %c0 = arith.constant 0 : index
    %c0_0 = arith.constant 0 : index
    %c0_1 = arith.constant 0 : index
    %0 = vector.load %arg2[%c0, %c0_0, %c0_1] : memref<1x16x512xbf16, #tpu.memory_space<vmem>>, vector<1x16x512xbf16>
    %1 = vector.shape_cast %0 : vector<1x16x512xbf16> to vector<16x512xbf16>
    %c0_2 = arith.constant 0 : index
    %c0_3 = arith.constant 0 : index
    %c0_4 = arith.constant 0 : index
    %2 = vector.load %arg3[%c0_2, %c0_3, %c0_4] : memref<4x8x16xbf16, #tpu.memory_space<vmem>>, vector<1x8x16xbf16>
    %3 = vector.shape_cast %2 : vector<1x8x16xbf16> to vector<8x16xbf16>
    %4 = vector.extract_strided_slice %1 {offsets = [0, 0], sizes = [16, 384], strides = [1, 1]} : vector<16x512xbf16> to vector<16x384xbf16>
    %cst = arith.constant dense<0.000000e+00> : vector<8x384xf32>
    %5 = tpu.matmul %3, %4, %cst {dimension_numbers = #tpu.dot_dimension_numbers<[1], [0], [0], [1], [0, 0, 1, 1], [], []>} : vector<8x16xbf16>, vector<16x384xbf16>, vector<8x384xf32> -> vector<8x384xf32>
    %c1 = arith.constant 1 : index
    %c0_5 = arith.constant 0 : index
    %c0_6 = arith.constant 0 : index
    %6 = vector.load %arg3[%c1, %c0_5, %c0_6] : memref<4x8x16xbf16, #tpu.memory_space<vmem>>, vector<1x8x16xbf16>
    %7 = vector.shape_cast %6 : vector<1x8x16xbf16> to vector<8x16xbf16>
    %8 = vector.extract_strided_slice %1 {offsets = [0, 1], sizes = [16, 384], strides = [1, 1]} : vector<16x512xbf16> to vector<16x384xbf16>
    %cst_7 = arith.constant dense<0.000000e+00> : vector<8x384xf32>
    %9 = tpu.matmul %7, %8, %cst_7 {dimension_numbers = #tpu.dot_dimension_numbers<[1], [0], [0], [1], [0, 0, 1, 1], [], []>} : vector<8x16xbf16>, vector<16x384xbf16>, vector<8x384xf32> -> vector<8x384xf32>
    %10 = arith.addf %5, %9 : vector<8x384xf32>
    %c2 = arith.constant 2 : index
    %c0_8 = arith.constant 0 : index
    %c0_9 = arith.constant 0 : index
    %11 = vector.load %arg3[%c2, %c0_8, %c0_9] : memref<4x8x16xbf16, #tpu.memory_space<vmem>>, vector<1x8x16xbf16>
    %12 = vector.shape_cast %11 : vector<1x8x16xbf16> to vector<8x16xbf16>
    %13 = vector.extract_strided_slice %1 {offsets = [0, 9], sizes = [16, 384], strides = [1, 1]} : vector<16x512xbf16> to vector<16x384xbf16>
    %cst_10 = arith.constant dense<0.000000e+00> : vector<8x384xf32>
    %14 = tpu.matmul %12, %13, %cst_10 {dimension_numbers = #tpu.dot_dimension_numbers<[1], [0], [0], [1], [0, 0, 1, 1], [], []>} : vector<8x16xbf16>, vector<16x384xbf16>, vector<8x384xf32> -> vector<8x384xf32>
    %15 = arith.addf %10, %14 : vector<8x384xf32>
    %c3 = arith.constant 3 : index
    %c0_11 = arith.constant 0 : index
    %c0_12 = arith.constant 0 : index
    %16 = vector.load %arg3[%c3, %c0_11, %c0_12] : memref<4x8x16xbf16, #tpu.memory_space<vmem>>, vector<1x8x16xbf16>
    %17 = vector.shape_cast %16 : vector<1x8x16xbf16> to vector<8x16xbf16>
    %18 = vector.extract_strided_slice %1 {offsets = [0, 10], sizes = [16, 384], strides = [1, 1]} : vector<16x512xbf16> to vector<16x384xbf16>
    %cst_13 = arith.constant dense<0.000000e+00> : vector<8x384xf32>
    %19 = tpu.matmul %17, %18, %cst_13 {dimension_numbers = #tpu.dot_dimension_numbers<[1], [0], [0], [1], [0, 0, 1, 1], [], []>} : vector<8x16xbf16>, vector<16x384xbf16>, vector<8x384xf32> -> vector<8x384xf32>
    %20 = arith.addf %15, %19 : vector<8x384xf32>
    %c0_14 = arith.constant 0 : index
    %c0_15 = arith.constant 0 : index
    %21 = vector.load %arg4[%c0_14, %c0_15] : memref<8x1xf32, #tpu.memory_space<vmem>>, vector<8x1xf32>
    %22 = vector.broadcast %21 : vector<8x1xf32> to vector<8x384xf32>
    %23 = arith.mulf %20, %22 : vector<8x384xf32>
    %c0_16 = arith.constant 0 : index
    %c0_17 = arith.constant 0 : index
    %24 = vector.load %arg5[%c0_16, %c0_17] : memref<8x1xf32, #tpu.memory_space<vmem>>, vector<8x1xf32>
    %25 = vector.broadcast %24 : vector<8x1xf32> to vector<8x384xf32>
    %26 = arith.addf %23, %25 : vector<8x384xf32>
    %cst_18 = arith.constant 0.000000e+00 : f32
    %27 = vector.broadcast %cst_18 : f32 to vector<8x384xf32>
    %28 = arith.maximumf %26, %27 : vector<8x384xf32>
    %c0_19 = arith.constant 0 : index
    %c0_20 = arith.constant 0 : index
    %c0_21 = arith.constant 0 : index
    %29 = vector.load %arg6[%c0_19, %c0_20, %c0_21] : memref<1x8x384xf32, #tpu.memory_space<vmem>>, vector<1x8x384xf32>
    %30 = vector.shape_cast %29 : vector<1x8x384xf32> to vector<8x384xf32>
    %31 = vector.shape_cast %28 : vector<8x384xf32> to vector<1x8x384xf32>
    tpu.vector_store %arg6[%c0_19, %c0_20, %c0_21], %31 {strides = array<i32>} : memref<1x8x384xf32, #tpu.memory_space<vmem>>, vector<1x8x384xf32>,
    return
  }
  func.func @transform_0(%arg0: i32, %arg1: i32) -> (i32, i32, i32) {
    %c0_i32 = arith.constant 0 : i32
    %c0_i32_0 = arith.constant 0 : i32
    return %arg0, %c0_i32, %arg1 : i32, i32, i32
  }
  func.func @transform_1(%arg0: i32, %arg1: i32) -> (i32, i32, i32) {
    %c0_i32 = arith.constant 0 : i32
    %c0_i32_0 = arith.constant 0 : i32
    %c0_i32_1 = arith.constant 0 : i32
    %c0_i32_2 = arith.constant 0 : i32
    return %c0_i32, %c0_i32_0, %c0_i32_1 : i32, i32, i32
  }
  func.func @transform_2(%arg0: i32, %arg1: i32) -> (i32, i32) {
    %c0_i32 = arith.constant 0 : i32
    %c0_i32_0 = arith.constant 0 : i32
    %c0_i32_1 = arith.constant 0 : i32
    return %c0_i32, %c0_i32_0 : i32, i32
  }
  func.func @transform_3(%arg0: i32, %arg1: i32) -> (i32, i32) {
    %c0_i32 = arith.constant 0 : i32
    %c0_i32_0 = arith.constant 0 : i32
    %c0_i32_1 = arith.constant 0 : i32
    return %c0_i32, %c0_i32_0 : i32, i32
  }
  func.func @transform_4(%arg0: i32, %arg1: i32) -> (i32, i32, i32) {
    %c0_i32 = arith.constant 0 : i32
    %c0_i32_0 = arith.constant 0 : i32
    return %arg0, %c0_i32, %arg1 : i32, i32, i32
  }
}

</mosaic_0001>

<llo_original>
// kernel: tpu_custom_call.1
$region0: #{tpu_custom_call.1}
  #allocation0 [shape = 'u32[]', space=smem, size = 0x4, offset = 0x4, fixed_abs, tag = 'smem constant byte address 0x4 - core index']
  #allocation1 [shape = 'u32[144,128]{1,0:T(1,128)}', space=vmem, size = 0x12000, scoped, tag = 'internal scratch']
  %s0 = inlined_call_operand.hbm [shape: bf16[2,16,512], index: 0, kind: input, shape index: {}]
  %s1 = inlined_call_operand.vmem [shape: bf16[4,8,16], index: 1, kind: input, shape index: {}]
  %s2 = inlined_call_operand.vmem [shape: f32[8,1], index: 2, kind: input, shape index: {}]
  %s3 = inlined_call_operand.vmem [shape: f32[8,1], index: 3, kind: input, shape index: {}]
  %s4 = inlined_call_operand.hbm [shape: f32[2,8,384], index: 4, kind: output, shape index: {}]
  %s5 = sld [smem:[#allocation0]]
  $region53: #{tpu_custom_call.1} parent=0
    _
  %s7 = ssub.s32 1, %s5
  %s8 = scalar_select 0, %s7, %s5
  $region1: #{tpu_custom_call.1} parent=0
    #allocation2 [shape = 'u8[32768]{0}', space=vmem, size = 0x8000, scoped, tag = 'input window, operand 0']
    #allocation3 [shape = 's32[2]{0}', space=sflag, size = 0x8, scoped, tag = 'scoped memory for tpu_custom_call.1']
    #allocation4 [shape = 's32[2]{0}', space=sflag, size = 0x8, scoped, tag = 'scoped memory for tpu_custom_call.1']
    #allocation5 [shape = 'u8[24576]{0}', space=vmem, size = 0x6000, scoped, tag = 'output window, operand 0']
    %9 = vsyncpa [#allocation3], 0
    %s10 = scalar_lea.sflag [#allocation3], 1
    %11 = vsyncpa %s10, 0
    %12 = vsyncpa [#allocation4], 0
    %s13 = scalar_lea.sflag [#allocation4], 1
    %14 = vsyncpa %s13, 0
    loop: start=0, step=1, limit=4
    $region2: #{tpu_custom_call.1} parent=1 // loop_pre_header
      _
    $region3: #{tpu_custom_call.1} parent=1 // loop_header
      %s16 = sphi 0, %s20
      %p17 = scmp.ge.s32.totalorder %s16, 4
      %s23 = sphi 0, %s35
      %s24 = sphi 0, %s31
      %s25 = sphi 0, %s23
      %s26 = sphi 0, %s24
      %s27 = sphi 0, %s25
      %s28 = sphi 0, %s26
      %s40 = sphi 0, %s42
      %s43 = sphi 0, %s40
      %s44 = sphi 0, %s43
      %s60 = sphi 0, %s44
      %s64 = sphi 0, %s64
      %s66 = sphi 0, %s64
      %s67 = sphi 0, %s66
      %s81 = sphi 0, %s67
      %s85 = sphi 0, %s85
      %s87 = sphi 0, %s85
      %s88 = sphi 0, %s87
      %s102 = sphi 0, %s88
      %s106 = sphi 0, %s106
      %s108 = sphi 0, %s106
      %s109 = sphi 0, %s108
      %s123 = sphi 0, %s109
      %s131 = sphi 0, %s133
      %s134 = sphi 0, %s131
      %s135 = sphi 0, %s134
      %s151 = sphi 0, %s135
    $region4: #{tpu_custom_call.1} parent=1 // loop_header_branch
      %19 = sbr.rel (%p17) target = $region8
    $region5: #{tpu_custom_call.1} parent=1 // loop_body
      %s21 = ssub.s32 %s16, 1
      %s22 = ssub.s32 %s16, 2
      %s29 = sadd.s32 1, %s24
      %p30 = scmp.ge.s32.totalorder %s29, 1
      %s31 = scalar_select %p30, 0, %s29
      %s32 = sadd.s32 1, %s23
      %s33 = scalar_select %p30, %s32, %s23
      %p34 = scmp.ge.s32.totalorder %s33, 2
      %s35 = scalar_select %p34, 0, %s33
      %s36 = ssub.s32 %s23, %s35
      %s37 = ssub.s32 %s24, %s31
      %s38 = sor.u32 %s36, %s37
      %p39 = scmp.eq.s32.totalorder %s38, 0
      %s41 = sadd.s32 %s40, 1
      %s42 = scalar_select %p39, %s40, %s41
      %p45 = pneg %p39
      %p46 = scmp.eq.s32.totalorder %s16, 1
      %p47 = por %p45, %p46
      %p48 = scmp.ne.s32.totalorder %s40, %s43
      %p49 = scmp.eq.s32.totalorder %s16, 0
      %p50 = por %p48, %p49
      %p51 = scmp.ne.s32.totalorder %s40, %s43
      %p52 = scmp.eq.s32.totalorder %s21, 1
      %p53 = por %p51, %p52
      %p54 = scmp.ne.s32.totalorder %s43, %s44
      %p55 = scmp.eq.s32.totalorder %s21, 0
      %p56 = por %p54, %p55
      %p57 = scmp.ne.s32.totalorder %s43, %s44
      %p58 = scmp.eq.s32.totalorder %s22, 1
      %p59 = por %p57, %p58
      %p61 = scmp.ne.s32.totalorder %s44, %s60
      %p62 = scmp.eq.s32.totalorder %s22, 0
      %p63 = por %p61, %p62
      %s65 = sadd.s32 %s64, 1
      %p68 = scmp.eq.s32.totalorder %s16, 1
      %p69 = scmp.ne.s32.totalorder %s64, %s66
      %p70 = scmp.eq.s32.totalorder %s16, 0
      %p71 = por %p69, %p70
      %p72 = scmp.ne.s32.totalorder %s64, %s66
      %p73 = scmp.eq.s32.totalorder %s21, 1
      %p74 = por %p72, %p73
      %p75 = scmp.ne.s32.totalorder %s66, %s67
      %p76 = scmp.eq.s32.totalorder %s21, 0
      %p77 = por %p75, %p76
      %p78 = scmp.ne.s32.totalorder %s66, %s67
      %p79 = scmp.eq.s32.totalorder %s22, 1
      %p80 = por %p78, %p79
      %p82 = scmp.ne.s32.totalorder %s67, %s81
      %p83 = scmp.eq.s32.totalorder %s22, 0
      %p84 = por %p82, %p83
      %s86 = sadd.s32 %s85, 1
      %p89 = scmp.eq.s32.totalorder %s16, 1
      %p90 = scmp.ne.s32.totalorder %s85, %s87
      %p91 = scmp.eq.s32.totalorder %s16, 0
      %p92 = por %p90, %p91
      %p93 = scmp.ne.s32.totalorder %s85, %s87
      %p94 = scmp.eq.s32.totalorder %s21, 1
      %p95 = por %p93, %p94
      %p96 = scmp.ne.s32.totalorder %s87, %s88
      %p97 = scmp.eq.s32.totalorder %s21, 0
      %p98 = por %p96, %p97
      %p99 = scmp.ne.s32.totalorder %s87, %s88
      %p100 = scmp.eq.s32.totalorder %s22, 1
      %p101 = por %p99, %p100
      %p103 = scmp.ne.s32.totalorder %s88, %s102
      %p104 = scmp.eq.s32.totalorder %s22, 0
      %p105 = por %p103, %p104
      %s107 = sadd.s32 %s106, 1
      %p110 = scmp.eq.s32.totalorder %s16, 1
      %p111 = scmp.ne.s32.totalorder %s106, %s108
      %p112 = scmp.eq.s32.totalorder %s16, 0
      %p113 = por %p111, %p112
      %p114 = scmp.ne.s32.totalorder %s106, %s108
      %p115 = scmp.eq.s32.totalorder %s21, 1
      %p116 = por %p114, %p115
      %p117 = scmp.ne.s32.totalorder %s108, %s109
      %p118 = scmp.eq.s32.totalorder %s21, 0
      %p119 = por %p117, %p118
      %p120 = scmp.ne.s32.totalorder %s108, %s109
      %p121 = scmp.eq.s32.totalorder %s22, 1
      %p122 = por %p120, %p121
      %p124 = scmp.ne.s32.totalorder %s109, %s123
      %p125 = scmp.eq.s32.totalorder %s22, 0
      %p126 = por %p124, %p125
      %s127 = ssub.s32 %s23, %s35
      %s128 = ssub.s32 %s24, %s31
      %s129 = sor.u32 %s127, %s128
      %p130 = scmp.eq.s32.totalorder %s129, 0
      %s132 = sadd.s32 %s131, 1
      %s133 = scalar_select %p130, %s131, %s132
      %p136 = pneg %p130
      %p137 = scmp.eq.s32.totalorder %s16, 1
      %p138 = por %p136, %p137
      %p139 = scmp.ne.s32.totalorder %s131, %s134
      %p140 = scmp.eq.s32.totalorder %s16, 0
      %p141 = por %p139, %p140
      %p142 = scmp.ne.s32.totalorder %s131, %s134
      %p143 = scmp.eq.s32.totalorder %s21, 1
      %p144 = por %p142, %p143
      %p145 = scmp.ne.s32.totalorder %s134, %s135
      %p146 = scmp.eq.s32.totalorder %s21, 0
      %p147 = por %p145, %p146
      %p148 = scmp.ne.s32.totalorder %s134, %s135
      %p149 = scmp.eq.s32.totalorder %s22, 1
      %p150 = por %p148, %p149
      %p152 = scmp.ne.s32.totalorder %s135, %s151
      %p153 = scmp.eq.s32.totalorder %s22, 0
      %p154 = por %p152, %p153
      %p155 = scmp.le.s32.totalorder 1, %s16
      %p156 = scmp.lt.s32.totalorder %s16, 3
      %p157 = pnand %p155, %p156
      %p158 = pneg %p157
      // Predicated region
      $region9: #{tpu_custom_call.1} parent=5 // pred_check
        _
      $region10: #{tpu_custom_call.1} parent=5 // pred_check_branch
        %160 = sbr.rel (%p157) target = $region12
      $region11: #{tpu_custom_call.1} parent=5 // pred_region
        %s161 = ssub.s32 %s16, 1
        // Predicated region
        $region13: #{tpu_custom_call.1} parent=11 // pred_check
          %p162 = pneg %p77
        $region14: #{tpu_custom_call.1} parent=11 // pred_check_branch
          %164 = sbr.rel (%p162) target = $region16
        $region15: #{tpu_custom_call.1} parent=11 // pred_region
          _
        $region16: #{tpu_custom_call.1} parent=11 // pred_fallthru
          _
        // Predicated region
        $region17: #{tpu_custom_call.1} parent=11 // pred_check
          %p165 = pneg %p98
        $region18: #{tpu_custom_call.1} parent=11 // pred_check_branch
          %167 = sbr.rel (%p165) target = $region20
        $region19: #{tpu_custom_call.1} parent=11 // pred_region
          _
        $region20: #{tpu_custom_call.1} parent=11 // pred_fallthru
          _
        // Predicated region
        $region21: #{tpu_custom_call.1} parent=11 // pred_check
          %p168 = pneg %p119
        $region22: #{tpu_custom_call.1} parent=11 // pred_check_branch
          %170 = sbr.rel (%p168) target = $region24
        $region23: #{tpu_custom_call.1} parent=11 // pred_region
          _
        $region24: #{tpu_custom_call.1} parent=11 // pred_fallthru
          _
      $region12: #{tpu_custom_call.1} parent=5 // pred_fallthru
        _
      %p171 = scmp.lt.s32.totalorder %s16, 2
      // Predicated region
      $region25: #{tpu_custom_call.1} parent=5 // pred_check
        %p172 = pneg %p171
      $region26: #{tpu_custom_call.1} parent=5 // pred_check_branch
        %174 = sbr.rel (%p172) target = $region28
      $region27: #{tpu_custom_call.1} parent=5 // pred_region
        // Predicated region
        $region29: #{tpu_custom_call.1} parent=27 // pred_check
          %p175 = pneg %p50
        $region30: #{tpu_custom_call.1} parent=27 // pred_check_branch
          %177 = sbr.rel (%p175) target = $region32
        $region31: #{tpu_custom_call.1} parent=27 // pred_region
          %s178 = sand.u32 %s40, 1
          %s179 = scalar_lea.sflag [#allocation3], %s178
          %s180 = sand.u32 %s40, 1
          %s181 = smul.addr %s180, 32
          %s182 = scalar_lea.vmem [#allocation2], %s181
          %s183 = smul.u32 4, %s24
          %s185 = ssub.s32 512, 512
          %186 = vsyncadd %s179, %s185
          %s187 = smul.addr %s23, 8
          %s188 = sadd.s32 %s183, %s187
          %s189 = smul.addr %s188, 64
          %s190 = scalar_lea.hbm %s0, %s189
          %s191 = sshll.u32 %s182, 4
          %s192 = int_to_ptr.vmem [resolvable:$true] %s191
          %197 = dma.hbm_to_vmem [thread:$0]  %s190, 512, %s192, %s179, 256, 256, 16
        $region32: #{tpu_custom_call.1} parent=27 // pred_fallthru
          _
      $region28: #{tpu_custom_call.1} parent=5 // pred_fallthru
        _
      %p198 = scmp.le.s32.totalorder 1, %s16
      %p199 = scmp.lt.s32.totalorder %s16, 3
      %p200 = pnand %p198, %p199
      %p201 = pneg %p200
      // Predicated region
      $region33: #{tpu_custom_call.1} parent=5 // pred_check
        _
      $region34: #{tpu_custom_call.1} parent=5 // pred_check_branch
        %203 = sbr.rel (%p200) target = $region36
      $region35: #{tpu_custom_call.1} parent=5 // pred_region
        %s204 = ssub.s32 %s16, 1
        %s205 = sand.u32 %s43, 1
        %s206 = scalar_lea.sflag [#allocation3], %s205
        %s207 = sand.u32 %s43, 1
        %s208 = smul.addr %s207, 32
        %s209 = scalar_lea.vmem [#allocation2], %s208
        // Predicated region
        $region37: #{tpu_custom_call.1} parent=35 // pred_check
          %p210 = pneg %p56
        $region38: #{tpu_custom_call.1} parent=35 // pred_check_branch
          %212 = sbr.rel (%p210) target = $region40
        $region39: #{tpu_custom_call.1} parent=35 // pred_region
          %213 = dma.done %s206, 512
        $region40: #{tpu_custom_call.1} parent=35 // pred_fallthru
          _
        %s214 = sand.u32 %s43, 1
        %s215 = scalar_lea.sflag [#allocation3], %s214
        %s216 = sand.u32 %s43, 1
        %s217 = smul.addr %s216, 32
        %s218 = scalar_lea.vmem [#allocation2], %s217
        %p219 = pneg %p56
        %p220 = pneg %p53
        %p221 = pneg %p77
        %p222 = pneg %p74
        %p223 = pneg %p98
        %p224 = pneg %p95
        %p225 = pneg %p119
        %p226 = pneg %p116
        %p227 = pneg %p147
        %p228 = pneg %p144
        %s229 = sand.u32 %s134, 1
        %s230 = scalar_lea.sflag [#allocation4], %s229
        %s231 = sand.u32 %s134, 1
        %s232 = smul.addr %s231, 24
        %s233 = scalar_lea.vmem [#allocation5], %s232
        %s234 = smul.u32 4, %s26
        %s235 = smul.u32 3, %s26
        %v237 = vld [vmem:[%s209] sm:$0xff]
        %v238 = vld [vmem:[%s209 + $0x8] sm:$0xff]
        %v239 = vld [vmem:[%s209 + $0x10] sm:$0xff]
        %v240 = vld [vmem:[%s209 + $0x18] sm:$0xff]
        %v241 = vld [vmem:[%s1] sm:$0xf]
        %s242 = scalar_lea.vmem %s1, 4
        %v243 = vld [vmem:[%s242] sm:$0xf]
        %v248 = vunpack.c.l.b16 %v237
        %v249 = vunpack.c.h.b16 %v237
        %v250 = vunpack.c.l.b16 %v238
        %v251 = vunpack.c.h.b16 %v238
        %v252 = vunpack.c.l.b16 %v239
        %v253 = vunpack.c.h.b16 %v239
        %v254 = vunpack.c.l.b16 %v240
        %v255 = vunpack.c.h.b16 %v240
        %v256 = vpack.c.b16 %v252, %v248
        %v257 = vpack.c.b16 %v253, %v249
        %v258 = vpack.c.b16 %v254, %v250
        %v259 = vpack.c.b16 %v255, %v251
        %260 = vrot.lane.b32.xlu0 %v256, 127
        %v261 = vpop.permute.xlu0 %260
        %262 = vrot.lane.b32.xlu0 %v257, 127
        %v263 = vpop.permute.xlu0 %262
        %264 = vrot.lane.b32.xlu0 %v258, 127
        %v265 = vpop.permute.xlu0 %264
        %266 = vrot.lane.b32.xlu0 %v259, 127
        %v267 = vpop.permute.xlu0 %266
        %vm268 = vcmask 1039360
        %v269 = vsel %vm268, %v261, %v263
        %v270 = vsel %vm268, %v263, %v265
        %v271 = vsel %vm268, %v265, %v267
        %vm275 = vcmask 130048
        %v277 = vsel %vm275, %v243, 0
        %279 = vmatprep.subr.bf16.mxu0 %v270
        %280 = vmatpush1.bf16.msra.mxu0 %v269
        %281 = vmatprep.subr.bf16.mxu0 0
        %282 = vmatpush1.bf16.msra.mxu0 0
        %283 = vmatprep.subr.bf16.mxu0 0
        %284 = vmatpush1.bf16.msra.mxu0 0
        %285 = vmatprep.subr.bf16.mxu0 0
        %286 = vmatpush1.bf16.msra.mxu0 0
        %287 = vmatprep.subr.bf16.mxu0 0
        %288 = vmatpush1.bf16.msra.mxu0 0
        %289 = vmatprep.subr.bf16.mxu0 0
        %290 = vmatpush1.bf16.msra.mxu0 0
        %291 = vmatprep.subr.bf16.mxu0 0
        %292 = vmatpush1.bf16.msra.mxu0 0
        %293 = vmatprep.subr.bf16.mxu0 0
        %294 = vmatpush1.bf16.msra.mxu0 0
        %295 = vmatprep.subr.bf16.mxu0 0
        %296 = vmatpush1.bf16.msra.mxu0 0
        %297 = vmatprep.subr.bf16.mxu0 0
        %298 = vmatpush1.bf16.msra.mxu0 0
        %299 = vmatprep.subr.bf16.mxu0 0
        %300 = vmatpush1.bf16.msra.mxu0 0
        %301 = vmatprep.subr.bf16.mxu0 0
        %302 = vmatpush1.bf16.msra.mxu0 0
        %303 = vmatprep.subr.bf16.mxu0 0
        %304 = vmatpush1.bf16.msra.mxu0 0
        %305 = vmatprep.subr.bf16.mxu0 0
        %306 = vmatpush1.bf16.msra.mxu0 0
        %307 = vmatprep.subr.bf16.mxu0 0
        %308 = vmatpush1.bf16.msra.mxu0 0
        %309 = vmatprep.subr.bf16.mxu0 0
        %310 = vmatpush1.bf16.msra.mxu0 0
        %311 = vmatprep.mubr.bf16.mxu0 0
        %312 = vmatmul.mubr.bf16.gmra.mrb[0].mxu0 %v277
        %v313 = vpop.f32.mrb[0].mxu0
        %v314 = vadd.f32 0.0, %v313
        %v315 = vpop.f32.mrb[0].mxu0
        %v316 = vadd.f32 0.0, %v315
        %v317 = vpop.f32.mrb[0].mxu0
        %v318 = vpop.f32.mrb[0].mxu0
        %319 = vdwg.mxu0
        %320 = vmatprep.subr.bf16.mxu0 0
        %321 = vmatpush1.bf16.msra.mxu0 %v271
        %322 = vmatprep.subr.bf16.mxu0 0
        %323 = vmatpush1.bf16.msra.mxu0 0
        %324 = vmatprep.subr.bf16.mxu0 0
        %325 = vmatpush1.bf16.msra.mxu0 0
        %326 = vmatprep.subr.bf16.mxu0 0
        %327 = vmatpush1.bf16.msra.mxu0 0
        %328 = vmatprep.subr.bf16.mxu0 0
        %329 = vmatpush1.bf16.msra.mxu0 0
        %330 = vmatprep.subr.bf16.mxu0 0
        %331 = vmatpush1.bf16.msra.mxu0 0
        %332 = vmatprep.subr.bf16.mxu0 0
        %333 = vmatpush1.bf16.msra.mxu0 0
        %334 = vmatprep.subr.bf16.mxu0 0
        %335 = vmatpush1.bf16.msra.mxu0 0
        %336 = vmatprep.subr.bf16.mxu0 0
        %337 = vmatpush1.bf16.msra.mxu0 0
        %338 = vmatprep.subr.bf16.mxu0 0
        %339 = vmatpush1.bf16.msra.mxu0 0
        %340 = vmatprep.subr.bf16.mxu0 0
        %341 = vmatpush1.bf16.msra.mxu0 0
        %342 = vmatprep.subr.bf16.mxu0 0
        %343 = vmatpush1.bf16.msra.mxu0 0
        %344 = vmatprep.subr.bf16.mxu0 0
        %345 = vmatpush1.bf16.msra.mxu0 0
        %346 = vmatprep.subr.bf16.mxu0 0
        %347 = vmatpush1.bf16.msra.mxu0 0
        %348 = vmatprep.subr.bf16.mxu0 0
        %349 = vmatpush1.bf16.msra.mxu0 0
        %350 = vmatprep.subr.bf16.mxu0 0
        %351 = vmatpush1.bf16.msra.mxu0 0
        %352 = vmatprep.mubr.bf16.mxu0 0
        %353 = vmatmul.mubr.bf16.gmra.mrb[0].mxu0 %v277
        %v354 = vpop.f32.mrb[0].mxu0
        %v355 = vadd.f32 0.0, %v354
        %v356 = vpop.f32.mrb[0].mxu0
        %v357 = vpop.f32.mrb[0].mxu0
        %v358 = vpop.f32.mrb[0].mxu0
        %359 = vdwg.mxu0
        %v364 = vsel %vm275, %v241, 0
        %366 = vmatprep.subr.bf16.mxu0 %v257
        %367 = vmatpush1.bf16.msra.mxu0 %v256
        %368 = vmatprep.subr.bf16.mxu0 0
        %369 = vmatpush1.bf16.msra.mxu0 0
        %370 = vmatprep.subr.bf16.mxu0 0
        %371 = vmatpush1.bf16.msra.mxu0 0
        %372 = vmatprep.subr.bf16.mxu0 0
        %373 = vmatpush1.bf16.msra.mxu0 0
        %374 = vmatprep.subr.bf16.mxu0 0
        %375 = vmatpush1.bf16.msra.mxu0 0
        %376 = vmatprep.subr.bf16.mxu0 0
        %377 = vmatpush1.bf16.msra.mxu0 0
        %378 = vmatprep.subr.bf16.mxu0 0
        %379 = vmatpush1.bf16.msra.mxu0 0
        %380 = vmatprep.subr.bf16.mxu0 0
        %381 = vmatpush1.bf16.msra.mxu0 0
        %382 = vmatprep.subr.bf16.mxu0 0
        %383 = vmatpush1.bf16.msra.mxu0 0
        %384 = vmatprep.subr.bf16.mxu0 0
        %385 = vmatpush1.bf16.msra.mxu0 0
        %386 = vmatprep.subr.bf16.mxu0 0
        %387 = vmatpush1.bf16.msra.mxu0 0
        %388 = vmatprep.subr.bf16.mxu0 0
        %389 = vmatpush1.bf16.msra.mxu0 0
        %390 = vmatprep.subr.bf16.mxu0 0
        %391 = vmatpush1.bf16.msra.mxu0 0
        %392 = vmatprep.subr.bf16.mxu0 0
        %393 = vmatpush1.bf16.msra.mxu0 0
        %394 = vmatprep.subr.bf16.mxu0 0
        %395 = vmatpush1.bf16.msra.mxu0 0
        %396 = vmatprep.subr.bf16.mxu0 0
        %397 = vmatpush1.bf16.msra.mxu0 0
        %398 = vmatprep.mubr.bf16.mxu0 0
        %399 = vmatmul.mubr.bf16.gmra.mrb[0].mxu0 %v364
        %v400 = vpop.f32.mrb[0].mxu0
        %v401 = vadd.f32 %v314, %v400
        %v402 = vpop.f32.mrb[0].mxu0
        %v403 = vadd.f32 %v316, %v402
        %v404 = vpop.f32.mrb[0].mxu0
        %v405 = vpop.f32.mrb[0].mxu0
        %406 = vdwg.mxu0
        %407 = vmatprep.subr.bf16.mxu0 0
        %408 = vmatpush1.bf16.msra.mxu0 %v258
        %409 = vmatprep.subr.bf16.mxu0 0
        %410 = vmatpush1.bf16.msra.mxu0 0
        %411 = vmatprep.subr.bf16.mxu0 0
        %412 = vmatpush1.bf16.msra.mxu0 0
        %413 = vmatprep.subr.bf16.mxu0 0
        %414 = vmatpush1.bf16.msra.mxu0 0
        %415 = vmatprep.subr.bf16.mxu0 0
        %416 = vmatpush1.bf16.msra.mxu0 0
        %417 = vmatprep.subr.bf16.mxu0 0
        %418 = vmatpush1.bf16.msra.mxu0 0
        %419 = vmatprep.subr.bf16.mxu0 0
        %420 = vmatpush1.bf16.msra.mxu0 0
        %421 = vmatprep.subr.bf16.mxu0 0
        %422 = vmatpush1.bf16.msra.mxu0 0
        %423 = vmatprep.subr.bf16.mxu0 0
        %424 = vmatpush1.bf16.msra.mxu0 0
        %425 = vmatprep.subr.bf16.mxu0 0
        %426 = vmatpush1.bf16.msra.mxu0 0
        %427 = vmatprep.subr.bf16.mxu0 0
        %428 = vmatpush1.bf16.msra.mxu0 0
        %429 = vmatprep.subr.bf16.mxu0 0
        %430 = vmatpush1.bf16.msra.mxu0 0
        %431 = vmatprep.subr.bf16.mxu0 0
        %432 = vmatpush1.bf16.msra.mxu0 0
        %433 = vmatprep.subr.bf16.mxu0 0
        %434 = vmatpush1.bf16.msra.mxu0 0
        %435 = vmatprep.subr.bf16.mxu0 0
        %436 = vmatpush1.bf16.msra.mxu0 0
        %437 = vmatprep.subr.bf16.mxu0 0
        %438 = vmatpush1.bf16.msra.mxu0 0
        %439 = vmatprep.mubr.bf16.mxu0 0
        %440 = vmatmul.mubr.bf16.gmra.mrb[0].mxu0 %v364
        %v441 = vpop.f32.mrb[0].mxu0
        %v442 = vadd.f32 %v355, %v441
        %v443 = vpop.f32.mrb[0].mxu0
        %v444 = vpop.f32.mrb[0].mxu0
        %v445 = vpop.f32.mrb[0].mxu0
        %446 = vdwg.mxu0
        %s447 = scalar_lea.vmem %s1, 8
        %v448 = vld [vmem:[%s447] sm:$0xf]
        %449 = vrot.lane.b32.xlu0 %v256, 119
        %v450 = vpop.permute.xlu0 %449
        %451 = vrot.lane.b32.xlu0 %v257, 119
        %v452 = vpop.permute.xlu0 %451
        %453 = vrot.lane.b32.xlu0 %v258, 119
        %v454 = vpop.permute.xlu0 %453
        %455 = vrot.lane.b32.xlu0 %v259, 119
        %v456 = vpop.permute.xlu0 %455
        %vm457 = vcmask 973824
        %v458 = vsel %vm457, %v450, %v452
        %v459 = vsel %vm457, %v452, %v454
        %v460 = vsel %vm457, %v454, %v456
        %v465 = vsel %vm275, %v448, 0
        %467 = vmatprep.subr.bf16.mxu0 %v459
        %468 = vmatpush1.bf16.msra.mxu0 %v458
        %469 = vmatprep.subr.bf16.mxu0 0
        %470 = vmatpush1.bf16.msra.mxu0 0
        %471 = vmatprep.subr.bf16.mxu0 0
        %472 = vmatpush1.bf16.msra.mxu0 0
        %473 = vmatprep.subr.bf16.mxu0 0
        %474 = vmatpush1.bf16.msra.mxu0 0
        %475 = vmatprep.subr.bf16.mxu0 0
        %476 = vmatpush1.bf16.msra.mxu0 0
        %477 = vmatprep.subr.bf16.mxu0 0
        %478 = vmatpush1.bf16.msra.mxu0 0
        %479 = vmatprep.subr.bf16.mxu0 0
        %480 = vmatpush1.bf16.msra.mxu0 0
        %481 = vmatprep.subr.bf16.mxu0 0
        %482 = vmatpush1.bf16.msra.mxu0 0
        %483 = vmatprep.subr.bf16.mxu0 0
        %484 = vmatpush1.bf16.msra.mxu0 0
        %485 = vmatprep.subr.bf16.mxu0 0
        %486 = vmatpush1.bf16.msra.mxu0 0
        %487 = vmatprep.subr.bf16.mxu0 0
        %488 = vmatpush1.bf16.msra.mxu0 0
        %489 = vmatprep.subr.bf16.mxu0 0
        %490 = vmatpush1.bf16.msra.mxu0 0
        %491 = vmatprep.subr.bf16.mxu0 0
        %492 = vmatpush1.bf16.msra.mxu0 0
        %493 = vmatprep.subr.bf16.mxu0 0
        %494 = vmatpush1.bf16.msra.mxu0 0
        %495 = vmatprep.subr.bf16.mxu0 0
        %496 = vmatpush1.bf16.msra.mxu0 0
        %497 = vmatprep.subr.bf16.mxu0 0
        %498 = vmatpush1.bf16.msra.mxu0 0
        %499 = vmatprep.mubr.bf16.mxu0 0
        %500 = vmatmul.mubr.bf16.gmra.mrb[0].mxu0 %v465
        %v501 = vpop.f32.mrb[0].mxu0
        %v502 = vadd.f32 0.0, %v501
        %v503 = vpop.f32.mrb[0].mxu0
        %v504 = vadd.f32 0.0, %v503
        %v505 = vpop.f32.mrb[0].mxu0
        %v506 = vpop.f32.mrb[0].mxu0
        %507 = vdwg.mxu0
        %508 = vmatprep.subr.bf16.mxu0 0
        %509 = vmatpush1.bf16.msra.mxu0 %v460
        %510 = vmatprep.subr.bf16.mxu0 0
        %511 = vmatpush1.bf16.msra.mxu0 0
        %512 = vmatprep.subr.bf16.mxu0 0
        %513 = vmatpush1.bf16.msra.mxu0 0
        %514 = vmatprep.subr.bf16.mxu0 0
        %515 = vmatpush1.bf16.msra.mxu0 0
        %516 = vmatprep.subr.bf16.mxu0 0
        %517 = vmatpush1.bf16.msra.mxu0 0
        %518 = vmatprep.subr.bf16.mxu0 0
        %519 = vmatpush1.bf16.msra.mxu0 0
        %520 = vmatprep.subr.bf16.mxu0 0
        %521 = vmatpush1.bf16.msra.mxu0 0
        %522 = vmatprep.subr.bf16.mxu0 0
        %523 = vmatpush1.bf16.msra.mxu0 0
        %524 = vmatprep.subr.bf16.mxu0 0
        %525 = vmatpush1.bf16.msra.mxu0 0
        %526 = vmatprep.subr.bf16.mxu0 0
        %527 = vmatpush1.bf16.msra.mxu0 0
        %528 = vmatprep.subr.bf16.mxu0 0
        %529 = vmatpush1.bf16.msra.mxu0 0
        %530 = vmatprep.subr.bf16.mxu0 0
        %531 = vmatpush1.bf16.msra.mxu0 0
        %532 = vmatprep.subr.bf16.mxu0 0
        %533 = vmatpush1.bf16.msra.mxu0 0
        %534 = vmatprep.subr.bf16.mxu0 0
        %535 = vmatpush1.bf16.msra.mxu0 0
        %536 = vmatprep.subr.bf16.mxu0 0
        %537 = vmatpush1.bf16.msra.mxu0 0
        %538 = vmatprep.subr.bf16.mxu0 0
        %539 = vmatpush1.bf16.msra.mxu0 0
        %540 = vmatprep.mubr.bf16.mxu0 0
        %541 = vmatmul.mubr.bf16.gmra.mrb[0].mxu0 %v465
        %v542 = vpop.f32.mrb[0].mxu0
        %v543 = vadd.f32 0.0, %v542
        %v544 = vpop.f32.mrb[0].mxu0
        %v545 = vpop.f32.mrb[0].mxu0
        %v546 = vpop.f32.mrb[0].mxu0
        %547 = vdwg.mxu0
        %v548 = vadd.f32 %v401, %v502
        %v549 = vadd.f32 %v403, %v504
        %v550 = vadd.f32 %v442, %v543
        %s551 = scalar_lea.vmem %s1, 12
        %v552 = vld [vmem:[%s551] sm:$0xf]
        %553 = vrot.lane.b32.xlu0 %v256, 118
        %v554 = vpop.permute.xlu0 %553
        %555 = vrot.lane.b32.xlu0 %v257, 118
        %v556 = vpop.permute.xlu0 %555
        %557 = vrot.lane.b32.xlu0 %v258, 118
        %v558 = vpop.permute.xlu0 %557
        %559 = vrot.lane.b32.xlu0 %v259, 118
        %v560 = vpop.permute.xlu0 %559
        %vm561 = vcmask 965632
        %v562 = vsel %vm561, %v554, %v556
        %v563 = vsel %vm561, %v556, %v558
        %v564 = vsel %vm561, %v558, %v560
        %v569 = vsel %vm275, %v552, 0
        %571 = vmatprep.subr.bf16.mxu0 %v563
        %572 = vmatpush1.bf16.msra.mxu0 %v562
        %573 = vmatprep.subr.bf16.mxu0 0
        %574 = vmatpush1.bf16.msra.mxu0 0
        %575 = vmatprep.subr.bf16.mxu0 0
        %576 = vmatpush1.bf16.msra.mxu0 0
        %577 = vmatprep.subr.bf16.mxu0 0
        %578 = vmatpush1.bf16.msra.mxu0 0
        %579 = vmatprep.subr.bf16.mxu0 0
        %580 = vmatpush1.bf16.msra.mxu0 0
        %581 = vmatprep.subr.bf16.mxu0 0
        %582 = vmatpush1.bf16.msra.mxu0 0
        %583 = vmatprep.subr.bf16.mxu0 0
        %584 = vmatpush1.bf16.msra.mxu0 0
        %585 = vmatprep.subr.bf16.mxu0 0
        %586 = vmatpush1.bf16.msra.mxu0 0
        %587 = vmatprep.subr.bf16.mxu0 0
        %588 = vmatpush1.bf16.msra.mxu0 0
        %589 = vmatprep.subr.bf16.mxu0 0
        %590 = vmatpush1.bf16.msra.mxu0 0
        %591 = vmatprep.subr.bf16.mxu0 0
        %592 = vmatpush1.bf16.msra.mxu0 0
        %593 = vmatprep.subr.bf16.mxu0 0
        %594 = vmatpush1.bf16.msra.mxu0 0
        %595 = vmatprep.subr.bf16.mxu0 0
        %596 = vmatpush1.bf16.msra.mxu0 0
        %597 = vmatprep.subr.bf16.mxu0 0
        %598 = vmatpush1.bf16.msra.mxu0 0
        %599 = vmatprep.subr.bf16.mxu0 0
        %600 = vmatpush1.bf16.msra.mxu0 0
        %601 = vmatprep.subr.bf16.mxu0 0
        %602 = vmatpush1.bf16.msra.mxu0 0
        %603 = vmatprep.mubr.bf16.mxu0 0
        %604 = vmatmul.mubr.bf16.gmra.mrb[0].mxu0 %v569
        %v605 = vpop.f32.mrb[0].mxu0
        %v606 = vadd.f32 0.0, %v605
        %v607 = vpop.f32.mrb[0].mxu0
        %v608 = vadd.f32 0.0, %v607
        %v609 = vpop.f32.mrb[0].mxu0
        %v610 = vpop.f32.mrb[0].mxu0
        %611 = vdwg.mxu0
        %612 = vmatprep.subr.bf16.mxu0 0
        %613 = vmatpush1.bf16.msra.mxu0 %v564
        %614 = vmatprep.subr.bf16.mxu0 0
        %615 = vmatpush1.bf16.msra.mxu0 0
        %616 = vmatprep.subr.bf16.mxu0 0
        %617 = vmatpush1.bf16.msra.mxu0 0
        %618 = vmatprep.subr.bf16.mxu0 0
        %619 = vmatpush1.bf16.msra.mxu0 0
        %620 = vmatprep.subr.bf16.mxu0 0
        %621 = vmatpush1.bf16.msra.mxu0 0
        %622 = vmatprep.subr.bf16.mxu0 0
        %623 = vmatpush1.bf16.msra.mxu0 0
        %624 = vmatprep.subr.bf16.mxu0 0
        %625 = vmatpush1.bf16.msra.mxu0 0
        %626 = vmatprep.subr.bf16.mxu0 0
        %627 = vmatpush1.bf16.msra.mxu0 0
        %628 = vmatprep.subr.bf16.mxu0 0
        %629 = vmatpush1.bf16.msra.mxu0 0
        %630 = vmatprep.subr.bf16.mxu0 0
        %631 = vmatpush1.bf16.msra.mxu0 0
        %632 = vmatprep.subr.bf16.mxu0 0
        %633 = vmatpush1.bf16.msra.mxu0 0
        %634 = vmatprep.subr.bf16.mxu0 0
        %635 = vmatpush1.bf16.msra.mxu0 0
        %636 = vmatprep.subr.bf16.mxu0 0
        %637 = vmatpush1.bf16.msra.mxu0 0
        %638 = vmatprep.subr.bf16.mxu0 0
        %639 = vmatpush1.bf16.msra.mxu0 0
        %640 = vmatprep.subr.bf16.mxu0 0
        %641 = vmatpush1.bf16.msra.mxu0 0
        %642 = vmatprep.subr.bf16.mxu0 0
        %643 = vmatpush1.bf16.msra.mxu0 0
        %644 = vmatprep.mubr.bf16.mxu0 0
        %645 = vmatmul.mubr.bf16.gmra.mrb[0].mxu0 %v569
        %v646 = vpop.f32.mrb[0].mxu0
        %v647 = vadd.f32 0.0, %v646
        %v648 = vpop.f32.mrb[0].mxu0
        %v649 = vpop.f32.mrb[0].mxu0
        %v650 = vpop.f32.mrb[0].mxu0
        %651 = vdwg.mxu0
        %v652 = vadd.f32 %v548, %v606
        %v653 = vadd.f32 %v549, %v608
        %v654 = vadd.f32 %v550, %v647
        %v655 = vld [vmem:[%s2] sm:$0xff]
        %657 = vset.pattern.permute.xlu0 0
        %658 = vperm.xlu0 %657, %v655
        %v659 = vpop.permute.xlu0 %658
        %v661 = vmul.f32 %v652, %v659
        %v662 = vmul.f32 %v653, %v659
        %v663 = vmul.f32 %v654, %v659
        %v664 = vld [vmem:[%s3] sm:$0xff]
        %666 = vset.pattern.permute.xlu0 0
        %667 = vperm.xlu0 %666, %v664
        %v668 = vpop.permute.xlu0 %667
        %v670 = vadd.f32 %v661, %v668
        %v671 = vadd.f32 %v662, %v668
        %v672 = vadd.f32 %v663, %v668
        %v673 = vmax.f32 %v670, 0.0
        %v674 = vmax.f32 %v671, 0.0
        %v675 = vmax.f32 %v672, 0.0
        %676 = vst [vmem:[%s233] sm:$0xff] %v673
        %677 = vst [vmem:[%s233 + $0x8] sm:$0xff] %v674
        %678 = vst [vmem:[%s233 + $0x10] sm:$0xff] %v675
        %s679 = sand.u32 %s134, 1
        %s680 = scalar_lea.sflag [#allocation4], %s679
        %s681 = sand.u32 %s134, 1
        %s682 = smul.addr %s681, 24
        %s683 = scalar_lea.vmem [#allocation5], %s682
        // Predicated region
        $region41: #{tpu_custom_call.1} parent=35 // pred_check
          %p684 = pneg %p144
        $region42: #{tpu_custom_call.1} parent=35 // pred_check_branch
          %686 = sbr.rel (%p684) target = $region44
        $region43: #{tpu_custom_call.1} parent=35 // pred_region
          %s687 = smul.u32 3, %s26
          %s689 = ssub.s32 384, 384
          %690 = vsyncadd %s680, %s689
          %s691 = smul.addr %s25, 3
          %s692 = sadd.s32 %s687, %s691
          %s693 = smul.addr %s692, 128
          %s694 = scalar_lea.hbm %s4, %s693
          %s696 = sshll.u32 %s683, 4
          %s697 = int_to_ptr.vmem [resolvable:$true] %s696
          %699 = dma.vmem_to_hbm [thread:$0]  %s697, 384, %s694, %s680
        $region44: #{tpu_custom_call.1} parent=35 // pred_fallthru
          _
      $region36: #{tpu_custom_call.1} parent=5 // pred_fallthru
        _
      %p700 = scmp.le.s32.totalorder 2, %s16
      // Predicated region
      $region45: #{tpu_custom_call.1} parent=5 // pred_check
        %p701 = pneg %p700
      $region46: #{tpu_custom_call.1} parent=5 // pred_check_branch
        %703 = sbr.rel (%p701) target = $region48
      $region47: #{tpu_custom_call.1} parent=5 // pred_region
        %s704 = ssub.s32 %s16, 2
        // Predicated region
        $region49: #{tpu_custom_call.1} parent=47 // pred_check
          %p705 = pneg %p150
        $region50: #{tpu_custom_call.1} parent=47 // pred_check_branch
          %707 = sbr.rel (%p705) target = $region52
        $region51: #{tpu_custom_call.1} parent=47 // pred_region
          %s708 = sand.u32 %s135, 1
          %s709 = scalar_lea.sflag [#allocation4], %s708
          %s710 = sand.u32 %s135, 1
          %s711 = smul.addr %s710, 24
          %s712 = scalar_lea.vmem [#allocation5], %s711
          %713 = dma.done %s709, 384
        $region52: #{tpu_custom_call.1} parent=47 // pred_fallthru
          _
      $region48: #{tpu_custom_call.1} parent=5 // pred_fallthru
        _
    $region6: #{tpu_custom_call.1} parent=1 // loop_footer
      %s20 = sadd.s32 1, %s16
    $region7: #{tpu_custom_call.1} parent=1 // loop_footer_branch
      %15 = sbr.rel target = $region3
    $region8: #{tpu_custom_call.1} parent=1 // loop_exit
      _
    %714 = vsyncpa [#allocation3], 1
    %s715 = scalar_lea.sflag [#allocation3], 1
    %716 = vsyncpa %s715, 1
    %717 = vsyncpa [#allocation4], 1
    %s718 = scalar_lea.sflag [#allocation4], 1
    %719 = vsyncpa %s718, 1

</llo_original>
